<compile_context>
chip_gen: v6e
topology: v6e:2x2x1
jax: 0.10.0
libtpu: 0.0.40
codegen_flags: <defaults>
</compile_context>

<pallas_src>
import jax
import jax.numpy as jnp
from jax.experimental import pallas as pl
from jax.experimental.pallas import tpu as pltpu

BN_EPS = 1e-5   # torch.nn.BatchNorm1d default
LANE = 128
SUBLANE = 8


def _round_up(x, m):
    return (x + m - 1) // m * m


# --------------------------------------------------------------------------- kernel
def _snli_kernel(tok_ref,                      # [2, TB, TL, H_p] bf16 (prem / hyp gathered V rows)
                 w1t_ref, w1b_ref, b1_ref,     # [H_p, J_p] bf16 x2, [1, J_p] f32
                 w2_ref, b2_ref,               # [J_p, J_p] bf16, [1, J_p] f32
                 w3_ref, b3_ref,               # [J_p, J_p] bf16, [1, J_p] f32
                 w_out_ref, b_out_ref,         # [J_p, O_p] bf16, [1, O_p] f32
                 out_ref,                      # [TB, O_p] f32
                 acc_ref):                     # [2*TB, H_p] f32 scratch (encoder sums)
    _, TB, TL, H = tok_ref.shape
    li = pl.program_id(1)

    @pl.when(li == 0)
    def _():
        acc_ref[...] = jnp.zeros_like(acc_ref)

    # Encoder: the embedding+projection+ReLU was folded into V in prepare_params, so the
    # per-token work here is just an f32-accumulated sum over this sequence chunk.
    x = tok_ref[...].reshape(2 * TB, TL, H)                                  # bf16 view
    acc_ref[...] += jnp.sum(x.astype(jnp.float32), axis=1)

    @pl.when(li == pl.num_programs(1) - 1)
    def _():
        h = acc_ref[...]                                                     # [2*TB, H] f32
        # BatchNorm (eval, affine=False, default stats) is folded into w1/w2/w3/w_out.
        p = h[:TB].astype(w1t_ref.dtype)                                     # premise    [TB, H]
        q = h[TB:].astype(w1b_ref.dtype)                                     # hypothesis [TB, H]

        # Joint layer 1: split half-matmuls replace the lane-axis concat.
        joint = (jnp.dot(p, w1t_ref[...], preferred_element_type=jnp.float32)
                 + jnp.dot(q, w1b_ref[...], preferred_element_type=jnp.float32)
                 + b1_ref[...])
        joint = jnp.maximum(joint, 0.0)
        # Dropout layers are identity in eval mode.

        for w_ref, b_ref in ((w2_ref, b2_ref), (w3_ref, b3_ref)):
            joint = jnp.dot(joint.astype(w_ref.dtype), w_ref[...],
                            preferred_element_type=jnp.float32) + b_ref[...]
            joint = jnp.maximum(joint, 0.0)

        out_ref[...] = (jnp.dot(joint.astype(w_out_ref.dtype), w_out_ref[...],
                                preferred_element_type=jnp.float32)
                        + b_out_ref[...])


# --------------------------------------------------------------------------- param prep
def prepare_params(p, compute_dtype=jnp.bfloat16):
    """Fold embed->proj->ReLU into a per-token table V, fold eval-mode BN scale into the
    downstream weights, pad lane dims to 128, cast to bf16."""
    s = 1.0 / jnp.sqrt(jnp.float32(1.0 + BN_EPS))
    vocab = p["W_emb"].shape[0]
    H = p["w_proj"].shape[1]
    J = 2 * H
    OUT = p["w_out"].shape[1]
    H_p, J_p, O_p = (_round_up(d, LANE) for d in (H, J, OUT))

    def padw(w, rows, cols):
        return jnp.pad(w, ((0, rows - w.shape[0]), (0, cols - w.shape[1])))

    # Eval-mode shortcut: embeddings and projection are frozen, so precompute
    # V[v] = ReLU(W_emb[v] @ w_proj + b_proj) once; the kernel only gathers & sums rows.
    V = jnp.maximum(p["W_emb"] @ p["w_proj"] + p["b_proj"], 0.0)             # [vocab, H] f32
    V = jnp.pad(V, ((0, 1), (0, H_p - H)))                                   # + zero pad row (id == vocab)

    w1 = p["w1"]
    prep = dict(
        V=V.astype(compute_dtype),
        # BN after the encode sum folded into layer-1 weights (split top/bottom halves).
        w1_top=(s * padw(w1[:H, :], H_p, J_p)).astype(compute_dtype),
        w1_bot=(s * padw(w1[H:, :], H_p, J_p)).astype(compute_dtype),
        b1=padw(p["b1"], 1, J_p).astype(jnp.float32),
        # BN after joint blocks 1..3 folded into the next consumer's weights.
        w2=(s * padw(p["w2"], J_p, J_p)).astype(compute_dtype),
        b2=padw(p["b2"], 1, J_p).astype(jnp.float32),
        w3=(s * padw(p["w3"], J_p, J_p)).astype(compute_dtype),
        b3=padw(p["b3"], 1, J_p).astype(jnp.float32),
        w_out=(s * padw(p["w_out"], J_p, O_p)).astype(compute_dtype),
        b_out=padw(p["b_out"], 1, O_p).astype(jnp.float32),
    )
    meta = dict(num_labels=OUT, H_p=H_p, J_p=J_p, O_p=O_p, pad_id=vocab)
    return prep, meta
    # TODO(synk): accept trained running_mean/running_var and fold them (shift+scale)
    # into the adjacent linear layers instead of assuming the default (0, 1) stats.


# --------------------------------------------------------------------------- tiling / VMEM budget
def _vmem_budget_bytes():
    cap = 64 * 1024 * 1024                      # conservative default (v7x physical)
    try:
        info = pltpu.get_tpu_info()
        cap = int(getattr(info, "vmem_capacity_bytes", cap) or cap)
    except Exception:
        pass
    return cap * 3 // 4                         # ~48 MiB on v7x, ~96 MiB on v5e/v6e


def _choose_tiles(B, L_pad, H_p, J_p, O_p, vmem_budget):
    # Sequence chunk: largest of {32, 16, 8} that divides the 8-padded sequence length.
    TL = 8
    for cand in (32, 16):
        if L_pad % cand == 0:
            TL = cand
            break

    # Resident weights (BlockSpec double-buffers them by default -> x2).
    weight_bytes = 2 * ((2 * H_p * J_p + 2 * J_p * J_p + J_p * O_p) * 2
                        + (3 * J_p + O_p) * 4)

    def footprint(tb):
        tok = 2 * (2 * tb * TL * H_p * 2)       # double-buffered bf16 token stream
        acc = 2 * tb * H_p * 4                  # f32 accumulator scratch
        out = 2 * (tb * O_p * 4)                # double-buffered f32 output tile
        mlp = 4 * tb * J_p * 4                  # joint-MLP live activations (rough)
        return tok + acc + out + mlp + weight_bytes

    TB = 512
    while TB > SUBLANE and footprint(TB) > vmem_budget:
        TB //= 2
    TB = max(SUBLANE, min(TB, _round_up(B, SUBLANE)))
    # v7x megacore: prefer >=2 balanced batch slices when the batch is big enough.
    if TB >= 256 and _round_up(B, TB) // TB < 2 and B > TB // 2:
        TB //= 2
    return TB, TL


# --------------------------------------------------------------------------- wrapper
def simple_model_forward(prem_ids, hyp_ids, prep, meta):
    """prem_ids / hyp_ids: [B, L] int32. Returns logits [B, num_labels] float32."""
    B, L = prem_ids.shape
    H_p, J_p, O_p = meta["H_p"], meta["J_p"], meta["O_p"]
    pad_id = meta["pad_id"]

    L_pad = _round_up(L, SUBLANE)
    vmem_budget = _vmem_budget_bytes()
    TB, TL = _choose_tiles(B, L_pad, H_p, J_p, O_p, vmem_budget)
    B_pad = _round_up(B, TB)

    ids = jnp.stack([prem_ids, hyp_ids], axis=0)                             # [2, B, L]
    ids = jnp.pad(ids, ((0, 0), (0, B_pad - B), (0, L_pad - L)),
                  constant_values=pad_id)                                    # pad id -> zero V row
    tok = jnp.take(prep["V"], ids, axis=0)                                   # [2, B_pad, L_pad, H_p] bf16
    # TODO(synk): gather V rows inside the kernel (scalar-prefetch ids + manual DMA from
    # an HBM-resident table) to eliminate the HBM write+read of `tok` entirely.

    weights = (prep["w1_top"], prep["w1_bot"], prep["b1"],
               prep["w2"], prep["b2"],
               prep["w3"], prep["b3"],
               prep["w_out"], prep["b_out"])

    def const_spec(a):
        # Constant index_map -> weight tile is fetched once and stays VMEM-resident.
        return pl.BlockSpec(a.shape, lambda i, l, _nd=a.ndim: (0,) * _nd)

    out = pl.pallas_call(
        _snli_kernel,
        out_shape=jax.ShapeDtypeStruct((B_pad, O_p), jnp.float32),
        grid_spec=pltpu.PrefetchScalarGridSpec(
            num_scalar_prefetch=0,
            grid=(B_pad // TB, L_pad // TL),
            in_specs=[pl.BlockSpec((2, TB, TL, H_p), lambda i, l: (0, i, l, 0))]
                     + [const_spec(w) for w in weights],
            out_specs=pl.BlockSpec((TB, O_p), lambda i, l: (i, 0)),
            scratch_shapes=[pltpu.VMEM((2 * TB, H_p), jnp.float32)],
        ),
        compiler_params=pltpu.CompilerParams(
            dimension_semantics=("parallel", "arbitrary"),   # batch across TCs, seq is a reduction
            vmem_limit_bytes=int(vmem_budget),
        ),
    )(tok, *weights)

    return out[:B, :meta["num_labels"]]


# --------------------------------------------------------------------------- init & reference
def _init_params(key, vocab_size, embedding_dim, hidden_size, num_labels):
    ks = jax.random.split(key, 10)

    def lin(k, fan_in, fan_out):
        bound = 1.0 / jnp.sqrt(fan_in)
        kw, kb = jax.random.split(k)
        w = jax.random.uniform(kw, (fan_in, fan_out), jnp.float32, -bound, bound)
        b = jax.random.uniform(kb, (1, fan_out), jnp.float32, -bound, bound)
        return w, b

    W_emb = jax.random.normal(ks[0], (vocab_size, embedding_dim), jnp.float32) * 0.1
    w_proj, b_proj = lin(ks[1], embedding_dim, hidden_size)
    w1, b1 = lin(ks[2], 2 * hidden_size, 2 * hidden_size)
    w2, b2 = lin(ks[3], 2 * hidden_size, 2 * hidden_size)
    w3, b3 = lin(ks[4], 2 * hidden_size, 2 * hidden_size)
    w_out, b_out = lin(ks[5], 2 * hidden_size, num_labels)
    return dict(W_emb=W_emb, w_proj=w_proj, b_proj=b_proj,
                w1=w1, b1=b1, w2=w2, b2=b2, w3=w3, b3=b3,
                w_out=w_out, b_out=b_out)


def _reference(prem_ids, hyp_ids, p):
    """Pure-JAX f32 reference of the PyTorch forward (eval mode)."""
    s = 1.0 / jnp.sqrt(1.0 + BN_EPS)

    def enc(ids):
        x = jnp.take(p["W_emb"], ids, axis=0)
        h = jnp.maximum(jnp.einsum("ble,eh->blh", x, p["w_proj"]) + p["b_proj"], 0.0)
        return h.sum(axis=1) * s

    j = jnp.concatenate([enc(prem_ids), enc(hyp_ids)], axis=-1)
    for w, b in ((p["w1"], p["b1"]), (p["w2"], p["b2"]), (p["w3"], p["b3"])):
        j = jnp.maximum(j @ w + b, 0.0) * s
    return j @ p["w_out"] + p["b_out"]


# --------------------------------------------------------------------------- demo
if __name__ == "__main__":
    # Small, module-consistent shapes (module default hidden=300; small for the demo).
    B, L = 16, 8
    vocab_size, emb_dim = 64, 32
    hidden_size = 32
    num_labels = 3            # len(LABELS) assumed 3 (SNLI)

    key = jax.random.PRNGKey(0)
    k_par, k_p, k_h = jax.random.split(key, 3)
    params = _init_params(k_par, vocab_size, emb_dim, hidden_size, num_labels)
    prem_ids = jax.random.randint(k_p, (B, L), 0, vocab_size, dtype=jnp.int32)
    hyp_ids = jax.random.randint(k_h, (B, L), 0, vocab_size, dtype=jnp.int32)

    prep, meta = prepare_params(params)
    logits = jax.block_until_ready(simple_model_forward(prem_ids, hyp_ids, prep, meta))

    ref = jax.block_until_ready(_reference(prem_ids, hyp_ids, params))
    assert logits.shape == (B, num_labels)
    assert jnp.allclose(logits, ref, atol=2e-2, rtol=2e-2), \
        float(jnp.max(jnp.abs(logits - ref)))
    print("KERNEL_OK")
</pallas_src>

<mosaic_0001>
module attributes {stable_mosaic.version = 11 : i64} {
  func.func @_snli_kernel(%arg0: i32, %arg1: i32, %arg2: memref<2x16x8x128xbf16, #tpu.memory_space<vmem>>, %arg3: memref<128x128xbf16, #tpu.memory_space<vmem>>, %arg4: memref<128x128xbf16, #tpu.memory_space<vmem>>, %arg5: memref<1x128xf32, #tpu.memory_space<vmem>>, %arg6: memref<128x128xbf16, #tpu.memory_space<vmem>>, %arg7: memref<1x128xf32, #tpu.memory_space<vmem>>, %arg8: memref<128x128xbf16, #tpu.memory_space<vmem>>, %arg9: memref<1x128xf32, #tpu.memory_space<vmem>>, %arg10: memref<128x128xbf16, #tpu.memory_space<vmem>>, %arg11: memref<1x128xf32, #tpu.memory_space<vmem>>, %arg12: memref<16x128xf32, #tpu.memory_space<vmem>>, %arg13: memref<32x128xf32, #tpu.memory_space<vmem>>) attributes {dimension_semantics = [#tpu.dimension_semantics<parallel>, #tpu.dimension_semantics<arbitrary>], iteration_bounds = array<i64: 1, 1>, scalar_prefetch = 0 : i64, scratch_operands = 1 : i64, tpu.core_type = #tpu.core_type<tc>, window_params = [{transform_indices = @transform_0, window_bounds = array<i64: 2, 16, 8, 128>}, {pipeline_mode = #tpu.pipeline_mode<synchronous>, transform_indices = @transform_1, window_bounds = array<i64: 128, 128>}, {pipeline_mode = #tpu.pipeline_mode<synchronous>, transform_indices = @transform_2, window_bounds = array<i64: 128, 128>}, {pipeline_mode = #tpu.pipeline_mode<synchronous>, transform_indices = @transform_3, window_bounds = array<i64: 1, 128>}, {pipeline_mode = #tpu.pipeline_mode<synchronous>, transform_indices = @transform_4, window_bounds = array<i64: 128, 128>}, {pipeline_mode = #tpu.pipeline_mode<synchronous>, transform_indices = @transform_5, window_bounds = array<i64: 1, 128>}, {pipeline_mode = #tpu.pipeline_mode<synchronous>, transform_indices = @transform_6, window_bounds = array<i64: 128, 128>}, {pipeline_mode = #tpu.pipeline_mode<synchronous>, transform_indices = @transform_7, window_bounds = array<i64: 1, 128>}, {pipeline_mode = #tpu.pipeline_mode<synchronous>, transform_indices = @transform_8, window_bounds = array<i64: 128, 128>}, {pipeline_mode = #tpu.pipeline_mode<synchronous>, transform_indices = @transform_9, window_bounds = array<i64: 1, 128>}, {transform_indices = @transform_10, window_bounds = array<i64: 16, 128>}]} {
    %c0_i32 = arith.constant 0 : i32
    %0 = arith.cmpi eq, %arg1, %c0_i32 : i32
    %1 = arith.extui %0 : i1 to i32
    %c0_i32_0 = arith.constant 0 : i32
    %2 = arith.cmpi ne, %1, %c0_i32_0 : i32
    scf.if %2 {
      %cst_10 = arith.constant 0.000000e+00 : f32
      %13 = vector.broadcast %cst_10 : f32 to vector<32x128xf32>
      %c0_11 = arith.constant 0 : index
      %c0_12 = arith.constant 0 : index
      %14 = vector.load %arg13[%c0_11, %c0_12] : memref<32x128xf32, #tpu.memory_space<vmem>>, vector<32x128xf32>
      tpu.vector_store %arg13[%c0_11, %c0_12], %13 {strides = array<i32>} : memref<32x128xf32, #tpu.memory_space<vmem>>, vector<32x128xf32>,
    } else {
    }
    %c0 = arith.constant 0 : index
    %c0_1 = arith.constant 0 : index
    %c0_2 = arith.constant 0 : index
    %c0_3 = arith.constant 0 : index
    %3 = vector.load %arg2[%c0, %c0_1, %c0_2, %c0_3] : memref<2x16x8x128xbf16, #tpu.memory_space<vmem>>, vector<2x16x8x128xbf16>
    %4 = vector.shape_cast %3 : vector<2x16x8x128xbf16> to vector<32x8x128xbf16>
    %c0_4 = arith.constant 0 : index
    %c0_5 = arith.constant 0 : index
    %5 = vector.load %arg13[%c0_4, %c0_5] : memref<32x128xf32, #tpu.memory_space<vmem>>, vector<32x128xf32>
    %6 = arith.extf %4 : vector<32x8x128xbf16> to vector<32x8x128xf32>
    %cst = arith.constant dense<0.000000e+00> : vector<32x128xf32>
    %7 = vector.multi_reduction <add>, %6, %cst [1] : vector<32x8x128xf32> to vector<32x128xf32>
    %8 = arith.addf %5, %7 : vector<32x128xf32>
    %c0_6 = arith.constant 0 : index
    %c0_7 = arith.constant 0 : index
    %9 = vector.load %arg13[%c0_6, %c0_7] : memref<32x128xf32, #tpu.memory_space<vmem>>, vector<32x128xf32>
    tpu.vector_store %arg13[%c0_6, %c0_7], %8 {strides = array<i32>} : memref<32x128xf32, #tpu.memory_space<vmem>>, vector<32x128xf32>,
    %c0_i32_8 = arith.constant 0 : i32
    %10 = arith.cmpi eq, %arg1, %c0_i32_8 : i32
    %11 = arith.extui %10 : i1 to i32
    %c0_i32_9 = arith.constant 0 : i32
    %12 = arith.cmpi ne, %11, %c0_i32_9 : i32
    scf.if %12 {
      %c0_10 = arith.constant 0 : index
      %c0_11 = arith.constant 0 : index
      %13 = vector.load %arg13[%c0_10, %c0_11] : memref<32x128xf32, #tpu.memory_space<vmem>>, vector<32x128xf32>
      %14 = vector.extract_strided_slice %13 {offsets = [0, 0], sizes = [16, 128], strides = [1, 1]} : vector<32x128xf32> to vector<16x128xf32>
      %15 = arith.truncf %14 : vector<16x128xf32> to vector<16x128xbf16>
      %16 = vector.extract_strided_slice %13 {offsets = [16, 0], sizes = [16, 128], strides = [1, 1]} : vector<32x128xf32> to vector<16x128xf32>
      %17 = arith.truncf %16 : vector<16x128xf32> to vector<16x128xbf16>
      %c0_12 = arith.constant 0 : index
      %c0_13 = arith.constant 0 : index
      %18 = vector.load %arg3[%c0_12, %c0_13] : memref<128x128xbf16, #tpu.memory_space<vmem>>, vector<128x128xbf16>
      %cst_14 = arith.constant dense<0.000000e+00> : vector<16x128xf32>
      %19 = tpu.matmul %15, %18, %cst_14 {dimension_numbers = #tpu.dot_dimension_numbers<[1], [0], [0], [1], [0, 0, 1, 1], [], []>} : vector<16x128xbf16>, vector<128x128xbf16>, vector<16x128xf32> -> vector<16x128xf32>
      %c0_15 = arith.constant 0 : index
      %c0_16 = arith.constant 0 : index
      %20 = vector.load %arg4[%c0_15, %c0_16] : memref<128x128xbf16, #tpu.memory_space<vmem>>, vector<128x128xbf16>
      %cst_17 = arith.constant dense<0.000000e+00> : vector<16x128xf32>
      %21 = tpu.matmul %17, %20, %cst_17 {dimension_numbers = #tpu.dot_dimension_numbers<[1], [0], [0], [1], [0, 0, 1, 1], [], []>} : vector<16x128xbf16>, vector<128x128xbf16>, vector<16x128xf32> -> vector<16x128xf32>
      %22 = arith.addf %19, %21 : vector<16x128xf32>
      %c0_18 = arith.constant 0 : index
      %c0_19 = arith.constant 0 : index
      %23 = vector.load %arg5[%c0_18, %c0_19] : memref<1x128xf32, #tpu.memory_space<vmem>>, vector<1x128xf32>
      %24 = vector.broadcast %23 : vector<1x128xf32> to vector<16x128xf32>
      %25 = arith.addf %22, %24 : vector<16x128xf32>
      %cst_20 = arith.constant 0.000000e+00 : f32
      %26 = vector.broadcast %cst_20 : f32 to vector<16x128xf32>
      %27 = arith.maximumf %25, %26 : vector<16x128xf32>
      %28 = arith.truncf %27 : vector<16x128xf32> to vector<16x128xbf16>
      %c0_21 = arith.constant 0 : index
      %c0_22 = arith.constant 0 : index
      %29 = vector.load %arg6[%c0_21, %c0_22] : memref<128x128xbf16, #tpu.memory_space<vmem>>, vector<128x128xbf16>
      %cst_23 = arith.constant dense<0.000000e+00> : vector<16x128xf32>
      %30 = tpu.matmul %28, %29, %cst_23 {dimension_numbers = #tpu.dot_dimension_numbers<[1], [0], [0], [1], [0, 0, 1, 1], [], []>} : vector<16x128xbf16>, vector<128x128xbf16>, vector<16x128xf32> -> vector<16x128xf32>
      %c0_24 = arith.constant 0 : index
      %c0_25 = arith.constant 0 : index
      %31 = vector.load %arg7[%c0_24, %c0_25] : memref<1x128xf32, #tpu.memory_space<vmem>>, vector<1x128xf32>
      %32 = vector.broadcast %31 : vector<1x128xf32> to vector<16x128xf32>
      %33 = arith.addf %30, %32 : vector<16x128xf32>
      %cst_26 = arith.constant 0.000000e+00 : f32
      %34 = vector.broadcast %cst_26 : f32 to vector<16x128xf32>
      %35 = arith.maximumf %33, %34 : vector<16x128xf32>
      %36 = arith.truncf %35 : vector<16x128xf32> to vector<16x128xbf16>
      %c0_27 = arith.constant 0 : index
      %c0_28 = arith.constant 0 : index
      %37 = vector.load %arg8[%c0_27, %c0_28] : memref<128x128xbf16, #tpu.memory_space<vmem>>, vector<128x128xbf16>
      %cst_29 = arith.constant dense<0.000000e+00> : vector<16x128xf32>
      %38 = tpu.matmul %36, %37, %cst_29 {dimension_numbers = #tpu.dot_dimension_numbers<[1], [0], [0], [1], [0, 0, 1, 1], [], []>} : vector<16x128xbf16>, vector<128x128xbf16>, vector<16x128xf32> -> vector<16x128xf32>
      %c0_30 = arith.constant 0 : index
      %c0_31 = arith.constant 0 : index
      %39 = vector.load %arg9[%c0_30, %c0_31] : memref<1x128xf32, #tpu.memory_space<vmem>>, vector<1x128xf32>
      %40 = vector.broadcast %39 : vector<1x128xf32> to vector<16x128xf32>
      %41 = arith.addf %38, %40 : vector<16x128xf32>
      %cst_32 = arith.constant 0.000000e+00 : f32
      %42 = vector.broadcast %cst_32 : f32 to vector<16x128xf32>
      %43 = arith.maximumf %41, %42 : vector<16x128xf32>
      %44 = arith.truncf %43 : vector<16x128xf32> to vector<16x128xbf16>
      %c0_33 = arith.constant 0 : index
      %c0_34 = arith.constant 0 : index
      %45 = vector.load %arg10[%c0_33, %c0_34] : memref<128x128xbf16, #tpu.memory_space<vmem>>, vector<128x128xbf16>
      %cst_35 = arith.constant dense<0.000000e+00> : vector<16x128xf32>
      %46 = tpu.matmul %44, %45, %cst_35 {dimension_numbers = #tpu.dot_dimension_numbers<[1], [0], [0], [1], [0, 0, 1, 1], [], []>} : vector<16x128xbf16>, vector<128x128xbf16>, vector<16x128xf32> -> vector<16x128xf32>
      %c0_36 = arith.constant 0 : index
      %c0_37 = arith.constant 0 : index
      %47 = vector.load %arg11[%c0_36, %c0_37] : memref<1x128xf32, #tpu.memory_space<vmem>>, vector<1x128xf32>
      %48 = vector.broadcast %47 : vector<1x128xf32> to vector<16x128xf32>
      %49 = arith.addf %46, %48 : vector<16x128xf32>
      %c0_38 = arith.constant 0 : index
      %c0_39 = arith.constant 0 : index
      %50 = vector.load %arg12[%c0_38, %c0_39] : memref<16x128xf32, #tpu.memory_space<vmem>>, vector<16x128xf32>
      tpu.vector_store %arg12[%c0_38, %c0_39], %49 {strides = array<i32>} : memref<16x128xf32, #tpu.memory_space<vmem>>, vector<16x128xf32>,
    } else {
    }
    return
  }
  func.func @transform_0(%arg0: i32, %arg1: i32) -> (i32, i32, i32, i32) {
    %c0_i32 = arith.constant 0 : i32
    %c0_i32_0 = arith.constant 0 : i32
    %c0_i32_1 = arith.constant 0 : i32
    return %c0_i32, %arg0, %arg1, %c0_i32_0 : i32, i32, i32, i32
  }
  func.func @transform_1(%arg0: i32, %arg1: i32) -> (i32, i32) {
    %c0_i32 = arith.constant 0 : i32
    %c0_i32_0 = arith.constant 0 : i32
    %c0_i32_1 = arith.constant 0 : i32
    return %c0_i32, %c0_i32_0 : i32, i32
  }
  func.func @transform_2(%arg0: i32, %arg1: i32) -> (i32, i32) {
    %c0_i32 = arith.constant 0 : i32
    %c0_i32_0 = arith.constant 0 : i32
    %c0_i32_1 = arith.constant 0 : i32
    return %c0_i32, %c0_i32_0 : i32, i32
  }
  func.func @transform_3(%arg0: i32, %arg1: i32) -> (i32, i32) {
    %c0_i32 = arith.constant 0 : i32
    %c0_i32_0 = arith.constant 0 : i32
    %c0_i32_1 = arith.constant 0 : i32
    return %c0_i32, %c0_i32_0 : i32, i32
  }
  func.func @transform_4(%arg0: i32, %arg1: i32) -> (i32, i32) {
    %c0_i32 = arith.constant 0 : i32
    %c0_i32_0 = arith.constant 0 : i32
    %c0_i32_1 = arith.constant 0 : i32
    return %c0_i32, %c0_i32_0 : i32, i32
  }
  func.func @transform_5(%arg0: i32, %arg1: i32) -> (i32, i32) {
    %c0_i32 = arith.constant 0 : i32
    %c0_i32_0 = arith.constant 0 : i32
    %c0_i32_1 = arith.constant 0 : i32
    return %c0_i32, %c0_i32_0 : i32, i32
  }
  func.func @transform_6(%arg0: i32, %arg1: i32) -> (i32, i32) {
    %c0_i32 = arith.constant 0 : i32
    %c0_i32_0 = arith.constant 0 : i32
    %c0_i32_1 = arith.constant 0 : i32
    return %c0_i32, %c0_i32_0 : i32, i32
  }
  func.func @transform_7(%arg0: i32, %arg1: i32) -> (i32, i32) {
    %c0_i32 = arith.constant 0 : i32
    %c0_i32_0 = arith.constant 0 : i32
    %c0_i32_1 = arith.constant 0 : i32
    return %c0_i32, %c0_i32_0 : i32, i32
  }
  func.func @transform_8(%arg0: i32, %arg1: i32) -> (i32, i32) {
    %c0_i32 = arith.constant 0 : i32
    %c0_i32_0 = arith.constant 0 : i32
    %c0_i32_1 = arith.constant 0 : i32
    return %c0_i32, %c0_i32_0 : i32, i32
  }
  func.func @transform_9(%arg0: i32, %arg1: i32) -> (i32, i32) {
    %c0_i32 = arith.constant 0 : i32
    %c0_i32_0 = arith.constant 0 : i32
    %c0_i32_1 = arith.constant 0 : i32
    return %c0_i32, %c0_i32_0 : i32, i32
  }
  func.func @transform_10(%arg0: i32, %arg1: i32) -> (i32, i32) {
    %c0_i32 = arith.constant 0 : i32
    %c0_i32_0 = arith.constant 0 : i32
    return %arg0, %c0_i32 : i32, i32
  }
}

</mosaic_0001>

<llo_original>
// kernel: tpu_custom_call.1
$region0: #{tpu_custom_call.1}
  #allocation0 [shape = 'u32[]', space=smem, size = 0x4, offset = 0x4, fixed_abs, tag = 'smem constant byte address 0x4 - core index']
  #allocation1 [shape = 'u32[144,128]{1,0:T(1,128)}', space=vmem, size = 0x12000, scoped, tag = 'internal scratch']
  #allocation2 [shape = 'f32[32,128]{1,0:T(8,128)}', space=vmem, size = 0x4000, scoped, tag = 'scratch operand']
  %s0 = inlined_call_operand.hbm [shape: bf16[2,16,8,128], index: 0, kind: input, shape index: {}]
  %s1 = inlined_call_operand.hbm [shape: bf16[128,128], index: 1, kind: input, shape index: {}]
  %s2 = inlined_call_operand.hbm [shape: bf16[128,128], index: 2, kind: input, shape index: {}]
  %s3 = inlined_call_operand.vmem [shape: f32[1,128], index: 3, kind: input, shape index: {}]
  %s4 = inlined_call_operand.hbm [shape: bf16[128,128], index: 4, kind: input, shape index: {}]
  %s5 = inlined_call_operand.vmem [shape: f32[1,128], index: 5, kind: input, shape index: {}]
  %s6 = inlined_call_operand.hbm [shape: bf16[128,128], index: 6, kind: input, shape index: {}]
  %s7 = inlined_call_operand.vmem [shape: f32[1,128], index: 7, kind: input, shape index: {}]
  %s8 = inlined_call_operand.hbm [shape: bf16[128,128], index: 8, kind: input, shape index: {}]
  %s9 = inlined_call_operand.vmem [shape: f32[1,128], index: 9, kind: input, shape index: {}]
  %s10 = inlined_call_operand.hbm [shape: f32[16,128], index: 10, kind: output, shape index: {}]
  %s11 = sld [smem:[#allocation0]]
  $region82: #{tpu_custom_call.1} parent=0
    _
  %s13 = ssub.s32 1, %s11
  %s14 = scalar_select 0, %s13, %s11
  $region1: #{tpu_custom_call.1} parent=0
    #allocation3 [shape = 'u8[65536]{0}', space=vmem, size = 0x10000, scoped, tag = 'input window, operand 0, single buffered']
    #allocation4 [shape = 's32[1]{0}', space=sflag, size = 0x4, scoped, tag = 'scoped memory for tpu_custom_call.1']
    #allocation5 [shape = 's32[1]{0}', space=sflag, size = 0x4, scoped, tag = 'scoped memory for tpu_custom_call.1']
    #allocation6 [shape = 'u8[32768]{0}', space=vmem, size = 0x8000, scoped, tag = 'input window, operand 1, single buffered']
    #allocation7 [shape = 's32[1]{0}', space=sflag, size = 0x4, scoped, tag = 'scoped memory for tpu_custom_call.1']
    #allocation8 [shape = 'u8[32768]{0}', space=vmem, size = 0x8000, scoped, tag = 'input window, operand 2, single buffered']
    #allocation9 [shape = 'u8[32768]{0}', space=vmem, size = 0x8000, scoped, tag = 'input window, operand 4, single buffered']
    #allocation10 [shape = 's32[1]{0}', space=sflag, size = 0x4, scoped, tag = 'scoped memory for tpu_custom_call.1']
    #allocation11 [shape = 'u8[32768]{0}', space=vmem, size = 0x8000, scoped, tag = 'input window, operand 6, single buffered']
    #allocation12 [shape = 'u8[32768]{0}', space=vmem, size = 0x8000, scoped, tag = 'input window, operand 8, single buffered']
    #allocation13 [shape = 's32[1]{0}', space=sflag, size = 0x4, scoped, tag = 'scoped memory for tpu_custom_call.1']
    #allocation14 [shape = 'u8[8192]{0}', space=vmem, size = 0x2000, scoped, tag = 'output window, operand 0, single buffered']
    %15 = vsyncpa [#allocation4], 0
    %16 = vsyncpa [#allocation7], 0
    %17 = vsyncpa [#allocation10], 0
    %18 = vsyncpa [#allocation13], 0
    %19 = vsyncpa [#allocation5], 0
    // Predicated region
    $region2: #{tpu_custom_call.1} parent=1 // pred_check
      _
    $region3: #{tpu_custom_call.1} parent=1 // pred_check_branch
      %21 = sbr.rel (0) target = $region5
    $region4: #{tpu_custom_call.1} parent=1 // pred_region
      %s23 = ssub.s32 2048, 2048
      %24 = vsyncadd [#allocation4], %s23
      %s25 = sshll.u32 [#allocation3], 4
      %s26 = int_to_ptr.vmem [resolvable:$true] %s25
      %31 = dma.hbm_to_vmem [thread:$0]  %s0, 2048, %s26, [#allocation4], 64, 64, 4
    $region5: #{tpu_custom_call.1} parent=1 // pred_fallthru
      _
    // Predicated region
    $region6: #{tpu_custom_call.1} parent=1 // pred_check
      _
    $region7: #{tpu_custom_call.1} parent=1 // pred_check_branch
      %33 = sbr.rel (0) target = $region9
    $region8: #{tpu_custom_call.1} parent=1 // pred_region
      %s35 = ssub.s32 1024, 1024
      %36 = vsyncadd [#allocation7], %s35
      %s37 = sshll.u32 [#allocation6], 4
      %s38 = int_to_ptr.vmem [resolvable:$true] %s37
      %43 = dma.hbm_to_vmem [thread:$0]  %s1, 1024, %s38, [#allocation7], 64, 64, 4
    $region9: #{tpu_custom_call.1} parent=1 // pred_fallthru
      _
    // Predicated region
    $region10: #{tpu_custom_call.1} parent=1 // pred_check
      _
    $region11: #{tpu_custom_call.1} parent=1 // pred_check_branch
      %45 = sbr.rel (0) target = $region13
    $region12: #{tpu_custom_call.1} parent=1 // pred_region
      %s47 = ssub.s32 1024, 1024
      %48 = vsyncadd [#allocation7], %s47
      %s49 = sshll.u32 [#allocation8], 4
      %s50 = int_to_ptr.vmem [resolvable:$true] %s49
      %55 = dma.hbm_to_vmem [thread:$0]  %s2, 1024, %s50, [#allocation7], 64, 64, 4
    $region13: #{tpu_custom_call.1} parent=1 // pred_fallthru
      _
    // Predicated region
    $region14: #{tpu_custom_call.1} parent=1 // pred_check
      _
    $region15: #{tpu_custom_call.1} parent=1 // pred_check_branch
      %57 = sbr.rel (0) target = $region17
    $region16: #{tpu_custom_call.1} parent=1 // pred_region
      _
    $region17: #{tpu_custom_call.1} parent=1 // pred_fallthru
      _
    // Predicated region
    $region18: #{tpu_custom_call.1} parent=1 // pred_check
      _
    $region19: #{tpu_custom_call.1} parent=1 // pred_check_branch
      %59 = sbr.rel (0) target = $region21
    $region20: #{tpu_custom_call.1} parent=1 // pred_region
      %s61 = ssub.s32 1024, 1024
      %62 = vsyncadd [#allocation10], %s61
      %s63 = sshll.u32 [#allocation9], 4
      %s64 = int_to_ptr.vmem [resolvable:$true] %s63
      %69 = dma.hbm_to_vmem [thread:$0]  %s4, 1024, %s64, [#allocation10], 64, 64, 4
    $region21: #{tpu_custom_call.1} parent=1 // pred_fallthru
      _
    // Predicated region
    $region22: #{tpu_custom_call.1} parent=1 // pred_check
      _
    $region23: #{tpu_custom_call.1} parent=1 // pred_check_branch
      %71 = sbr.rel (0) target = $region25
    $region24: #{tpu_custom_call.1} parent=1 // pred_region
      _
    $region25: #{tpu_custom_call.1} parent=1 // pred_fallthru
      _
    // Predicated region
    $region26: #{tpu_custom_call.1} parent=1 // pred_check
      _
    $region27: #{tpu_custom_call.1} parent=1 // pred_check_branch
      %73 = sbr.rel (0) target = $region29
    $region28: #{tpu_custom_call.1} parent=1 // pred_region
      %s75 = ssub.s32 1024, 1024
      %76 = vsyncadd [#allocation10], %s75
      %s77 = sshll.u32 [#allocation11], 4
      %s78 = int_to_ptr.vmem [resolvable:$true] %s77
      %83 = dma.hbm_to_vmem [thread:$0]  %s6, 1024, %s78, [#allocation10], 64, 64, 4
    $region29: #{tpu_custom_call.1} parent=1 // pred_fallthru
      _
    // Predicated region
    $region30: #{tpu_custom_call.1} parent=1 // pred_check
      _
    $region31: #{tpu_custom_call.1} parent=1 // pred_check_branch
      %85 = sbr.rel (0) target = $region33
    $region32: #{tpu_custom_call.1} parent=1 // pred_region
      _
    $region33: #{tpu_custom_call.1} parent=1 // pred_fallthru
      _
    // Predicated region
    $region34: #{tpu_custom_call.1} parent=1 // pred_check
      _
    $region35: #{tpu_custom_call.1} parent=1 // pred_check_branch
      %87 = sbr.rel (0) target = $region37
    $region36: #{tpu_custom_call.1} parent=1 // pred_region
      %s89 = ssub.s32 1024, 1024
      %90 = vsyncadd [#allocation13], %s89
      %s91 = sshll.u32 [#allocation12], 4
      %s92 = int_to_ptr.vmem [resolvable:$true] %s91
      %97 = dma.hbm_to_vmem [thread:$0]  %s8, 1024, %s92, [#allocation13], 64, 64, 4
    $region37: #{tpu_custom_call.1} parent=1 // pred_fallthru
      _
    // Predicated region
    $region38: #{tpu_custom_call.1} parent=1 // pred_check
      _
    $region39: #{tpu_custom_call.1} parent=1 // pred_check_branch
      %99 = sbr.rel (0) target = $region41
    $region40: #{tpu_custom_call.1} parent=1 // pred_region
      _
    $region41: #{tpu_custom_call.1} parent=1 // pred_fallthru
      _
    // Predicated region
    $region42: #{tpu_custom_call.1} parent=1 // pred_check
      _
    $region43: #{tpu_custom_call.1} parent=1 // pred_check_branch
      %101 = sbr.rel (0) target = $region45
    $region44: #{tpu_custom_call.1} parent=1 // pred_region
      %102 = dma.done [#allocation4], 2048
    $region45: #{tpu_custom_call.1} parent=1 // pred_fallthru
      _
    // Predicated region
    $region46: #{tpu_custom_call.1} parent=1 // pred_check
      _
    $region47: #{tpu_custom_call.1} parent=1 // pred_check_branch
      %104 = sbr.rel (0) target = $region49
    $region48: #{tpu_custom_call.1} parent=1 // pred_region
      %105 = dma.done [#allocation7], 1024
    $region49: #{tpu_custom_call.1} parent=1 // pred_fallthru
      _
    // Predicated region
    $region50: #{tpu_custom_call.1} parent=1 // pred_check
      _
    $region51: #{tpu_custom_call.1} parent=1 // pred_check_branch
      %107 = sbr.rel (0) target = $region53
    $region52: #{tpu_custom_call.1} parent=1 // pred_region
      %108 = dma.done [#allocation7], 1024
    $region53: #{tpu_custom_call.1} parent=1 // pred_fallthru
      _
    // Predicated region
    $region54: #{tpu_custom_call.1} parent=1 // pred_check
      _
    $region55: #{tpu_custom_call.1} parent=1 // pred_check_branch
      %110 = sbr.rel (0) target = $region57
    $region56: #{tpu_custom_call.1} parent=1 // pred_region
      %111 = dma.done [#allocation10], 1024
    $region57: #{tpu_custom_call.1} parent=1 // pred_fallthru
      _
    // Predicated region
    $region58: #{tpu_custom_call.1} parent=1 // pred_check
      _
    $region59: #{tpu_custom_call.1} parent=1 // pred_check_branch
      %113 = sbr.rel (0) target = $region61
    $region60: #{tpu_custom_call.1} parent=1 // pred_region
      %114 = dma.done [#allocation10], 1024
    $region61: #{tpu_custom_call.1} parent=1 // pred_fallthru
      _
    // Predicated region
    $region62: #{tpu_custom_call.1} parent=1 // pred_check
      _
    $region63: #{tpu_custom_call.1} parent=1 // pred_check_branch
      %116 = sbr.rel (0) target = $region65
    $region64: #{tpu_custom_call.1} parent=1 // pred_region
      %117 = dma.done [#allocation13], 1024
    $region65: #{tpu_custom_call.1} parent=1 // pred_fallthru
      _
    %p119 = scmp.eq.s32.totalorder 0, 0
    // Predicated region
    $region66: #{tpu_custom_call.1} parent=1 // pred_check
      %p120 = pneg %p119
    $region67: #{tpu_custom_call.1} parent=1 // pred_check_branch
      %122 = sbr.rel (%p120) target = $region69
    $region68: #{tpu_custom_call.1} parent=1 // pred_region
      %123 = vst [vmem:[#allocation2] sm:$0xff] 0.0
      %124 = vst [vmem:[#allocation2 + $0x8] sm:$0xff] 0.0
      %125 = vst [vmem:[#allocation2 + $0x10] sm:$0xff] 0.0
      %126 = vst [vmem:[#allocation2 + $0x18] sm:$0xff] 0.0
    $region69: #{tpu_custom_call.1} parent=1 // pred_fallthru
      _
    %v127 = vld [vmem:[#allocation3] sm:$0xf]
    %v128 = vld [vmem:[#allocation3 + $0x4] sm:$0xf]
    %v129 = vld [vmem:[#allocation3 + $0x8] sm:$0xf]
    %v130 = vld [vmem:[#allocation3 + $0xc] sm:$0xf]
    %v131 = vld [vmem:[#allocation3 + $0x10] sm:$0xf]
    %v132 = vld [vmem:[#allocation3 + $0x14] sm:$0xf]
    %v133 = vld [vmem:[#allocation3 + $0x18] sm:$0xf]
    %v134 = vld [vmem:[#allocation3 + $0x1c] sm:$0xf]
    %v135 = vld [vmem:[#allocation3 + $0x20] sm:$0xf]
    %v136 = vld [vmem:[#allocation3 + $0x24] sm:$0xf]
    %v137 = vld [vmem:[#allocation3 + $0x28] sm:$0xf]
    %v138 = vld [vmem:[#allocation3 + $0x2c] sm:$0xf]
    %v139 = vld [vmem:[#allocation3 + $0x30] sm:$0xf]
    %v140 = vld [vmem:[#allocation3 + $0x34] sm:$0xf]
    %v141 = vld [vmem:[#allocation3 + $0x38] sm:$0xf]
    %v142 = vld [vmem:[#allocation3 + $0x3c] sm:$0xf]
    %v143 = vld [vmem:[#allocation3 + $0x40] sm:$0xf]
    %v144 = vld [vmem:[#allocation3 + $0x44] sm:$0xf]
    %v145 = vld [vmem:[#allocation3 + $0x48] sm:$0xf]
    %v146 = vld [vmem:[#allocation3 + $0x4c] sm:$0xf]
    %v147 = vld [vmem:[#allocation3 + $0x50] sm:$0xf]
    %v148 = vld [vmem:[#allocation3 + $0x54] sm:$0xf]
    %v149 = vld [vmem:[#allocation3 + $0x58] sm:$0xf]
    %v150 = vld [vmem:[#allocation3 + $0x5c] sm:$0xf]
    %v151 = vld [vmem:[#allocation3 + $0x60] sm:$0xf]
    %v152 = vld [vmem:[#allocation3 + $0x64] sm:$0xf]
    %v153 = vld [vmem:[#allocation3 + $0x68] sm:$0xf]
    %v154 = vld [vmem:[#allocation3 + $0x6c] sm:$0xf]
    %v155 = vld [vmem:[#allocation3 + $0x70] sm:$0xf]
    %v156 = vld [vmem:[#allocation3 + $0x74] sm:$0xf]
    %v157 = vld [vmem:[#allocation3 + $0x78] sm:$0xf]
    %v158 = vld [vmem:[#allocation3 + $0x7c] sm:$0xf]
    %v159 = vld [vmem:[#allocation2] sm:$0xff]
    %v160 = vld [vmem:[#allocation2 + $0x8] sm:$0xff]
    %v161 = vld [vmem:[#allocation2 + $0x10] sm:$0xff]
    %v162 = vld [vmem:[#allocation2 + $0x18] sm:$0xff]
    %v163 = vunpack.c.l.bf16 %v127
    %v164 = vunpack.c.l.bf16 %v128
    %v165 = vunpack.c.l.bf16 %v129
    %v166 = vunpack.c.l.bf16 %v130
    %v167 = vunpack.c.l.bf16 %v131
    %v168 = vunpack.c.l.bf16 %v132
    %v169 = vunpack.c.l.bf16 %v133
    %v170 = vunpack.c.l.bf16 %v134
    %v171 = vunpack.c.l.bf16 %v135
    %v172 = vunpack.c.l.bf16 %v136
    %v173 = vunpack.c.l.bf16 %v137
    %v174 = vunpack.c.l.bf16 %v138
    %v175 = vunpack.c.l.bf16 %v139
    %v176 = vunpack.c.l.bf16 %v140
    %v177 = vunpack.c.l.bf16 %v141
    %v178 = vunpack.c.l.bf16 %v142
    %v179 = vunpack.c.l.bf16 %v143
    %v180 = vunpack.c.l.bf16 %v144
    %v181 = vunpack.c.l.bf16 %v145
    %v182 = vunpack.c.l.bf16 %v146
    %v183 = vunpack.c.l.bf16 %v147
    %v184 = vunpack.c.l.bf16 %v148
    %v185 = vunpack.c.l.bf16 %v149
    %v186 = vunpack.c.l.bf16 %v150
    %v187 = vunpack.c.l.bf16 %v151
    %v188 = vunpack.c.l.bf16 %v152
    %v189 = vunpack.c.l.bf16 %v153
    %v190 = vunpack.c.l.bf16 %v154
    %v191 = vunpack.c.l.bf16 %v155
    %v192 = vunpack.c.l.bf16 %v156
    %v193 = vunpack.c.l.bf16 %v157
    %v194 = vunpack.c.l.bf16 %v158
    %v195 = vrot.slane %v163, 4
    %v196 = vadd.f32 %v163, %v195
    %v197 = vrot.slane %v196, 2
    %v198 = vadd.f32 %v196, %v197
    %v199 = vrot.slane %v198, 1
    %v200 = vadd.f32 %v198, %v199
    %v201 = vrot.slane %v164, 4
    %v202 = vadd.f32 %v164, %v201
    %v203 = vrot.slane %v202, 2
    %v204 = vadd.f32 %v202, %v203
    %v205 = vrot.slane %v204, 1
    %v206 = vadd.f32 %v204, %v205
    %v207 = vrot.slane %v165, 4
    %v208 = vadd.f32 %v165, %v207
    %v209 = vrot.slane %v208, 2
    %v210 = vadd.f32 %v208, %v209
    %v211 = vrot.slane %v210, 1
    %v212 = vadd.f32 %v210, %v211
    %v213 = vrot.slane %v166, 4
    %v214 = vadd.f32 %v166, %v213
    %v215 = vrot.slane %v214, 2
    %v216 = vadd.f32 %v214, %v215
    %v217 = vrot.slane %v216, 1
    %v218 = vadd.f32 %v216, %v217
    %v219 = vrot.slane %v167, 4
    %v220 = vadd.f32 %v167, %v219
    %v221 = vrot.slane %v220, 2
    %v222 = vadd.f32 %v220, %v221
    %v223 = vrot.slane %v222, 1
    %v224 = vadd.f32 %v222, %v223
    %v225 = vrot.slane %v168, 4
    %v226 = vadd.f32 %v168, %v225
    %v227 = vrot.slane %v226, 2
    %v228 = vadd.f32 %v226, %v227
    %v229 = vrot.slane %v228, 1
    %v230 = vadd.f32 %v228, %v229
    %v231 = vrot.slane %v169, 4
    %v232 = vadd.f32 %v169, %v231
    %v233 = vrot.slane %v232, 2
    %v234 = vadd.f32 %v232, %v233
    %v235 = vrot.slane %v234, 1
    %v236 = vadd.f32 %v234, %v235
    %v237 = vrot.slane %v170, 4
    %v238 = vadd.f32 %v170, %v237
    %v239 = vrot.slane %v238, 2
    %v240 = vadd.f32 %v238, %v239
    %v241 = vrot.slane %v240, 1
    %v242 = vadd.f32 %v240, %v241
    %v243 = vrot.slane %v171, 4
    %v244 = vadd.f32 %v171, %v243
    %v245 = vrot.slane %v244, 2
    %v246 = vadd.f32 %v244, %v245
    %v247 = vrot.slane %v246, 1
    %v248 = vadd.f32 %v246, %v247
    %v249 = vrot.slane %v172, 4
    %v250 = vadd.f32 %v172, %v249
    %v251 = vrot.slane %v250, 2
    %v252 = vadd.f32 %v250, %v251
    %v253 = vrot.slane %v252, 1
    %v254 = vadd.f32 %v252, %v253
    %v255 = vrot.slane %v173, 4
    %v256 = vadd.f32 %v173, %v255
    %v257 = vrot.slane %v256, 2
    %v258 = vadd.f32 %v256, %v257
    %v259 = vrot.slane %v258, 1
    %v260 = vadd.f32 %v258, %v259
    %v261 = vrot.slane %v174, 4
    %v262 = vadd.f32 %v174, %v261
    %v263 = vrot.slane %v262, 2
    %v264 = vadd.f32 %v262, %v263
    %v265 = vrot.slane %v264, 1
    %v266 = vadd.f32 %v264, %v265
    %v267 = vrot.slane %v175, 4
    %v268 = vadd.f32 %v175, %v267
    %v269 = vrot.slane %v268, 2
    %v270 = vadd.f32 %v268, %v269
    %v271 = vrot.slane %v270, 1
    %v272 = vadd.f32 %v270, %v271
    %v273 = vrot.slane %v176, 4
    %v274 = vadd.f32 %v176, %v273
    %v275 = vrot.slane %v274, 2
    %v276 = vadd.f32 %v274, %v275
    %v277 = vrot.slane %v276, 1
    %v278 = vadd.f32 %v276, %v277
    %v279 = vrot.slane %v177, 4
    %v280 = vadd.f32 %v177, %v279
    %v281 = vrot.slane %v280, 2
    %v282 = vadd.f32 %v280, %v281
    %v283 = vrot.slane %v282, 1
    %v284 = vadd.f32 %v282, %v283
    %v285 = vrot.slane %v178, 4
    %v286 = vadd.f32 %v178, %v285
    %v287 = vrot.slane %v286, 2
    %v288 = vadd.f32 %v286, %v287
    %v289 = vrot.slane %v288, 1
    %v290 = vadd.f32 %v288, %v289
    %v291 = vrot.slane %v179, 4
    %v292 = vadd.f32 %v179, %v291
    %v293 = vrot.slane %v292, 2
    %v294 = vadd.f32 %v292, %v293
    %v295 = vrot.slane %v294, 1
    %v296 = vadd.f32 %v294, %v295
    %v297 = vrot.slane %v180, 4
    %v298 = vadd.f32 %v180, %v297
    %v299 = vrot.slane %v298, 2
    %v300 = vadd.f32 %v298, %v299
    %v301 = vrot.slane %v300, 1
    %v302 = vadd.f32 %v300, %v301
    %v303 = vrot.slane %v181, 4
    %v304 = vadd.f32 %v181, %v303
    %v305 = vrot.slane %v304, 2
    %v306 = vadd.f32 %v304, %v305
    %v307 = vrot.slane %v306, 1
    %v308 = vadd.f32 %v306, %v307
    %v309 = vrot.slane %v182, 4
    %v310 = vadd.f32 %v182, %v309
    %v311 = vrot.slane %v310, 2
    %v312 = vadd.f32 %v310, %v311
    %v313 = vrot.slane %v312, 1
    %v314 = vadd.f32 %v312, %v313
    %v315 = vrot.slane %v183, 4
    %v316 = vadd.f32 %v183, %v315
    %v317 = vrot.slane %v316, 2
    %v318 = vadd.f32 %v316, %v317
    %v319 = vrot.slane %v318, 1
    %v320 = vadd.f32 %v318, %v319
    %v321 = vrot.slane %v184, 4
    %v322 = vadd.f32 %v184, %v321
    %v323 = vrot.slane %v322, 2
    %v324 = vadd.f32 %v322, %v323
    %v325 = vrot.slane %v324, 1
    %v326 = vadd.f32 %v324, %v325
    %v327 = vrot.slane %v185, 4
    %v328 = vadd.f32 %v185, %v327
    %v329 = vrot.slane %v328, 2
    %v330 = vadd.f32 %v328, %v329
    %v331 = vrot.slane %v330, 1
    %v332 = vadd.f32 %v330, %v331
    %v333 = vrot.slane %v186, 4
    %v334 = vadd.f32 %v186, %v333
    %v335 = vrot.slane %v334, 2
    %v336 = vadd.f32 %v334, %v335
    %v337 = vrot.slane %v336, 1
    %v338 = vadd.f32 %v336, %v337
    %v339 = vrot.slane %v187, 4
    %v340 = vadd.f32 %v187, %v339
    %v341 = vrot.slane %v340, 2
    %v342 = vadd.f32 %v340, %v341
    %v343 = vrot.slane %v342, 1
    %v344 = vadd.f32 %v342, %v343
    %v345 = vrot.slane %v188, 4
    %v346 = vadd.f32 %v188, %v345
    %v347 = vrot.slane %v346, 2
    %v348 = vadd.f32 %v346, %v347
    %v349 = vrot.slane %v348, 1
    %v350 = vadd.f32 %v348, %v349
    %v351 = vrot.slane %v189, 4
    %v352 = vadd.f32 %v189, %v351
    %v353 = vrot.slane %v352, 2
    %v354 = vadd.f32 %v352, %v353
    %v355 = vrot.slane %v354, 1
    %v356 = vadd.f32 %v354, %v355
    %v357 = vrot.slane %v190, 4
    %v358 = vadd.f32 %v190, %v357
    %v359 = vrot.slane %v358, 2
    %v360 = vadd.f32 %v358, %v359
    %v361 = vrot.slane %v360, 1
    %v362 = vadd.f32 %v360, %v361
    %v363 = vrot.slane %v191, 4
    %v364 = vadd.f32 %v191, %v363
    %v365 = vrot.slane %v364, 2
    %v366 = vadd.f32 %v364, %v365
    %v367 = vrot.slane %v366, 1
    %v368 = vadd.f32 %v366, %v367
    %v369 = vrot.slane %v192, 4
    %v370 = vadd.f32 %v192, %v369
    %v371 = vrot.slane %v370, 2
    %v372 = vadd.f32 %v370, %v371
    %v373 = vrot.slane %v372, 1
    %v374 = vadd.f32 %v372, %v373
    %v375 = vrot.slane %v193, 4
    %v376 = vadd.f32 %v193, %v375
    %v377 = vrot.slane %v376, 2
    %v378 = vadd.f32 %v376, %v377
    %v379 = vrot.slane %v378, 1
    %v380 = vadd.f32 %v378, %v379
    %v381 = vrot.slane %v194, 4
    %v382 = vadd.f32 %v194, %v381
    %v383 = vrot.slane %v382, 2
    %v384 = vadd.f32 %v382, %v383
    %v385 = vrot.slane %v384, 1
    %v386 = vadd.f32 %v384, %v385
    %vm419 = vcmask 1041409
    %v420 = vsel %vm419, %v206, %v200
    %vm421 = vcmask 1042434
    %v422 = vsel %vm421, %v212, %v420
    %vm423 = vcmask 1043459
    %v424 = vsel %vm423, %v218, %v422
    %vm425 = vcmask 1044484
    %v426 = vsel %vm425, %v224, %v424
    %vm427 = vcmask 1045509
    %v428 = vsel %vm427, %v230, %v426
    %vm429 = vcmask 1046534
    %v430 = vsel %vm429, %v236, %v428
    %vm431 = vcmask 1047559
    %v432 = vsel %vm431, %v242, %v430
    %v433 = vsel %vm419, %v254, %v248
    %v434 = vsel %vm421, %v260, %v433
    %v435 = vsel %vm423, %v266, %v434
    %v436 = vsel %vm425, %v272, %v435
    %v437 = vsel %vm427, %v278, %v436
    %v438 = vsel %vm429, %v284, %v437
    %v439 = vsel %vm431, %v290, %v438
    %v440 = vsel %vm419, %v302, %v296
    %v441 = vsel %vm421, %v308, %v440
    %v442 = vsel %vm423, %v314, %v441
    %v443 = vsel %vm425, %v320, %v442
    %v444 = vsel %vm427, %v326, %v443
    %v445 = vsel %vm429, %v332, %v444
    %v446 = vsel %vm431, %v338, %v445
    %v447 = vsel %vm419, %v350, %v344
    %v448 = vsel %vm421, %v356, %v447
    %v449 = vsel %vm423, %v362, %v448
    %v450 = vsel %vm425, %v368, %v449
    %v451 = vsel %vm427, %v374, %v450
    %v452 = vsel %vm429, %v380, %v451
    %v453 = vsel %vm431, %v386, %v452
    %v458 = vadd.f32 %v159, %v432
    %v459 = vadd.f32 %v160, %v439
    %v460 = vadd.f32 %v161, %v446
    %v461 = vadd.f32 %v162, %v453
    %462 = vst [vmem:[#allocation2] sm:$0xff] %v458
    %463 = vst [vmem:[#allocation2 + $0x8] sm:$0xff] %v459
    %464 = vst [vmem:[#allocation2 + $0x10] sm:$0xff] %v460
    %465 = vst [vmem:[#allocation2 + $0x18] sm:$0xff] %v461
    // Predicated region
    $region70: #{tpu_custom_call.1} parent=1 // pred_check
      %p466 = pneg %p119
    $region71: #{tpu_custom_call.1} parent=1 // pred_check_branch
      %468 = sbr.rel (%p466) target = $region73
    $region72: #{tpu_custom_call.1} parent=1 // pred_region
      %v469 = vld [vmem:[#allocation2] sm:$0xff]
      %v470 = vld [vmem:[#allocation2 + $0x8] sm:$0xff]
      %v471 = vld [vmem:[#allocation2 + $0x10] sm:$0xff]
      %v472 = vld [vmem:[#allocation2 + $0x18] sm:$0xff]
      %v473 = vpack.c.bf16 %v470, %v469
      %v474 = vpack.c.bf16 %v472, %v471
      %v475 = vld [vmem:[#allocation6] sm:$0xf]
      %v476 = vld [vmem:[#allocation6 + $0x4] sm:$0xf]
      %v477 = vld [vmem:[#allocation6 + $0x8] sm:$0xf]
      %v478 = vld [vmem:[#allocation6 + $0xc] sm:$0xf]
      %v479 = vld [vmem:[#allocation6 + $0x10] sm:$0xf]
      %v480 = vld [vmem:[#allocation6 + $0x14] sm:$0xf]
      %v481 = vld [vmem:[#allocation6 + $0x18] sm:$0xf]
      %v482 = vld [vmem:[#allocation6 + $0x1c] sm:$0xf]
      %v483 = vld [vmem:[#allocation6 + $0x20] sm:$0xf]
      %v484 = vld [vmem:[#allocation6 + $0x24] sm:$0xf]
      %v485 = vld [vmem:[#allocation6 + $0x28] sm:$0xf]
      %v486 = vld [vmem:[#allocation6 + $0x2c] sm:$0xf]
      %v487 = vld [vmem:[#allocation6 + $0x30] sm:$0xf]
      %v488 = vld [vmem:[#allocation6 + $0x34] sm:$0xf]
      %v489 = vld [vmem:[#allocation6 + $0x38] sm:$0xf]
      %v490 = vld [vmem:[#allocation6 + $0x3c] sm:$0xf]
      %v491 = vld [vmem:[#allocation8] sm:$0xf]
      %v492 = vld [vmem:[#allocation8 + $0x4] sm:$0xf]
      %v493 = vld [vmem:[#allocation8 + $0x8] sm:$0xf]
      %v494 = vld [vmem:[#allocation8 + $0xc] sm:$0xf]
      %v495 = vld [vmem:[#allocation8 + $0x10] sm:$0xf]
      %v496 = vld [vmem:[#allocation8 + $0x14] sm:$0xf]
      %v497 = vld [vmem:[#allocation8 + $0x18] sm:$0xf]
      %v498 = vld [vmem:[#allocation8 + $0x1c] sm:$0xf]
      %v499 = vld [vmem:[#allocation8 + $0x20] sm:$0xf]
      %v500 = vld [vmem:[#allocation8 + $0x24] sm:$0xf]
      %v501 = vld [vmem:[#allocation8 + $0x28] sm:$0xf]
      %v502 = vld [vmem:[#allocation8 + $0x2c] sm:$0xf]
      %v503 = vld [vmem:[#allocation8 + $0x30] sm:$0xf]
      %v504 = vld [vmem:[#allocation8 + $0x34] sm:$0xf]
      %v505 = vld [vmem:[#allocation8 + $0x38] sm:$0xf]
      %v506 = vld [vmem:[#allocation8 + $0x3c] sm:$0xf]
      %v523 = vunpack.c.l.b16 %v491
      %v524 = vunpack.c.l.b16 %v492
      %v525 = vunpack.c.l.b16 %v493
      %v526 = vunpack.c.l.b16 %v494
      %v527 = vunpack.c.l.b16 %v495
      %v528 = vunpack.c.l.b16 %v496
      %v529 = vunpack.c.l.b16 %v497
      %v530 = vunpack.c.l.b16 %v498
      %v531 = vunpack.c.l.b16 %v499
      %v532 = vunpack.c.l.b16 %v500
      %v533 = vunpack.c.l.b16 %v501
      %v534 = vunpack.c.l.b16 %v502
      %v535 = vunpack.c.l.b16 %v503
      %v536 = vunpack.c.l.b16 %v504
      %v537 = vunpack.c.l.b16 %v505
      %v538 = vunpack.c.l.b16 %v506
      %v539 = vpack.c.b16 %v524, %v523
      %v540 = vpack.c.b16 %v526, %v525
      %v541 = vpack.c.b16 %v528, %v527
      %v542 = vpack.c.b16 %v530, %v529
      %v543 = vpack.c.b16 %v532, %v531
      %v544 = vpack.c.b16 %v534, %v533
      %v545 = vpack.c.b16 %v536, %v535
      %v546 = vpack.c.b16 %v538, %v537
      %555 = vmatprep.subr.bf16.mxu0 0
      %556 = vmatpush1.bf16.msra.mxu0 %v546
      %557 = vmatprep.subr.bf16.mxu0 0
      %558 = vmatpush1.bf16.msra.mxu0 %v545
      %559 = vmatprep.subr.bf16.mxu0 0
      %560 = vmatpush1.bf16.msra.mxu0 %v544
      %561 = vmatprep.subr.bf16.mxu0 0
      %562 = vmatpush1.bf16.msra.mxu0 %v543
      %563 = vmatprep.subr.bf16.mxu0 0
      %564 = vmatpush1.bf16.msra.mxu0 %v542
      %565 = vmatprep.subr.bf16.mxu0 0
      %566 = vmatpush1.bf16.msra.mxu0 %v541
      %567 = vmatprep.subr.bf16.mxu0 0
      %568 = vmatpush1.bf16.msra.mxu0 %v540
      %569 = vmatprep.subr.bf16.mxu0 0
      %570 = vmatpush1.bf16.msra.mxu0 %v539
      %571 = vmatprep.subr.bf16.mxu0 0
      %572 = vmatpush2.bf16.msra.mxu0 0
      %573 = vmatprep.subr.bf16.mxu0 0
      %574 = vmatpush2.bf16.msra.mxu0 0
      %575 = vmatprep.subr.bf16.mxu0 0
      %576 = vmatpush2.bf16.msra.mxu0 0
      %577 = vmatprep.subr.bf16.mxu0 0
      %578 = vmatpush2.bf16.msra.mxu0 0
      %579 = vmatprep.subr.bf16.mxu0 0
      %580 = vmatpush2.bf16.msra.mxu0 0
      %581 = vmatprep.subr.bf16.mxu0 0
      %582 = vmatpush2.bf16.msra.mxu0 0
      %583 = vmatprep.subr.bf16.mxu0 0
      %584 = vmatpush2.bf16.msra.mxu0 0
      %585 = vmatprep.subr.bf16.mxu0 0
      %586 = vmatpush2.bf16.msra.mxu0 0
      %587 = vmatprep.mubr.bf16.mxu0 0
      %588 = vmatmul.mubr.bf16.gmra.mxu0 %v474
      %v589 = vpop.f32.mrf.mxu0
      %v590 = vadd.f32 0.0, %v589
      %v591 = vpop.f32.mrf.mxu0
      %v592 = vpop.f32.mrf.mxu0
      %v593 = vadd.f32 0.0, %v592
      %v594 = vpop.f32.mrf.mxu0
      %595 = vdwg.mxu0
      %v612 = vunpack.c.l.b16 %v475
      %v613 = vunpack.c.l.b16 %v476
      %v614 = vunpack.c.l.b16 %v477
      %v615 = vunpack.c.l.b16 %v478
      %v616 = vunpack.c.l.b16 %v479
      %v617 = vunpack.c.l.b16 %v480
      %v618 = vunpack.c.l.b16 %v481
      %v619 = vunpack.c.l.b16 %v482
      %v620 = vunpack.c.l.b16 %v483
      %v621 = vunpack.c.l.b16 %v484
      %v622 = vunpack.c.l.b16 %v485
      %v623 = vunpack.c.l.b16 %v486
      %v624 = vunpack.c.l.b16 %v487
      %v625 = vunpack.c.l.b16 %v488
      %v626 = vunpack.c.l.b16 %v489
      %v627 = vunpack.c.l.b16 %v490
      %v628 = vpack.c.b16 %v613, %v612
      %v629 = vpack.c.b16 %v615, %v614
      %v630 = vpack.c.b16 %v617, %v616
      %v631 = vpack.c.b16 %v619, %v618
      %v632 = vpack.c.b16 %v621, %v620
      %v633 = vpack.c.b16 %v623, %v622
      %v634 = vpack.c.b16 %v625, %v624
      %v635 = vpack.c.b16 %v627, %v626
      %644 = vmatprep.subr.bf16.mxu0 0
      %645 = vmatpush1.bf16.msra.mxu0 %v635
      %646 = vmatprep.subr.bf16.mxu0 0
      %647 = vmatpush1.bf16.msra.mxu0 %v634
      %648 = vmatprep.subr.bf16.mxu0 0
      %649 = vmatpush1.bf16.msra.mxu0 %v633
      %650 = vmatprep.subr.bf16.mxu0 0
      %651 = vmatpush1.bf16.msra.mxu0 %v632
      %652 = vmatprep.subr.bf16.mxu0 0
      %653 = vmatpush1.bf16.msra.mxu0 %v631
      %654 = vmatprep.subr.bf16.mxu0 0
      %655 = vmatpush1.bf16.msra.mxu0 %v630
      %656 = vmatprep.subr.bf16.mxu0 0
      %657 = vmatpush1.bf16.msra.mxu0 %v629
      %658 = vmatprep.subr.bf16.mxu0 0
      %659 = vmatpush1.bf16.msra.mxu0 %v628
      %660 = vmatprep.subr.bf16.mxu0 0
      %661 = vmatpush2.bf16.msra.mxu0 0
      %662 = vmatprep.subr.bf16.mxu0 0
      %663 = vmatpush2.bf16.msra.mxu0 0
      %664 = vmatprep.subr.bf16.mxu0 0
      %665 = vmatpush2.bf16.msra.mxu0 0
      %666 = vmatprep.subr.bf16.mxu0 0
      %667 = vmatpush2.bf16.msra.mxu0 0
      %668 = vmatprep.subr.bf16.mxu0 0
      %669 = vmatpush2.bf16.msra.mxu0 0
      %670 = vmatprep.subr.bf16.mxu0 0
      %671 = vmatpush2.bf16.msra.mxu0 0
      %672 = vmatprep.subr.bf16.mxu0 0
      %673 = vmatpush2.bf16.msra.mxu0 0
      %674 = vmatprep.subr.bf16.mxu0 0
      %675 = vmatpush2.bf16.msra.mxu0 0
      %676 = vmatprep.mubr.bf16.mxu0 0
      %677 = vmatmul.mubr.bf16.gmra.mxu0 %v473
      %v678 = vpop.f32.mrf.mxu0
      %v679 = vadd.f32 %v590, %v678
      %v680 = vpop.f32.mrf.mxu0
      %v681 = vpop.f32.mrf.mxu0
      %v682 = vadd.f32 %v593, %v681
      %v683 = vpop.f32.mrf.mxu0
      %684 = vdwg.mxu0
      %v685 = vld [vmem:[%s3] sm:$0x1]
      %v687 = vlaneseq
      %v688 = vshrl.u32 %v687, 7
      %v689 = vsub.s32 0, %v688
      %v690 = vrot.slane %v685, %v689
      %v692 = vadd.f32 %v679, %v690
      %v693 = vadd.f32 %v682, %v690
      %v694 = vmax.f32 %v692, 0.0
      %v695 = vmax.f32 %v693, 0.0
      %v696 = vpack.c.bf16 %v695, %v694
      %v697 = vld [vmem:[#allocation9] sm:$0xf]
      %v698 = vld [vmem:[#allocation9 + $0x4] sm:$0xf]
      %v699 = vld [vmem:[#allocation9 + $0x8] sm:$0xf]
      %v700 = vld [vmem:[#allocation9 + $0xc] sm:$0xf]
      %v701 = vld [vmem:[#allocation9 + $0x10] sm:$0xf]
      %v702 = vld [vmem:[#allocation9 + $0x14] sm:$0xf]
      %v703 = vld [vmem:[#allocation9 + $0x18] sm:$0xf]
      %v704 = vld [vmem:[#allocation9 + $0x1c] sm:$0xf]
      %v705 = vld [vmem:[#allocation9 + $0x20] sm:$0xf]
      %v706 = vld [vmem:[#allocation9 + $0x24] sm:$0xf]
      %v707 = vld [vmem:[#allocation9 + $0x28] sm:$0xf]
      %v708 = vld [vmem:[#allocation9 + $0x2c] sm:$0xf]
      %v709 = vld [vmem:[#allocation9 + $0x30] sm:$0xf]
      %v710 = vld [vmem:[#allocation9 + $0x34] sm:$0xf]
      %v711 = vld [vmem:[#allocation9 + $0x38] sm:$0xf]
      %v712 = vld [vmem:[#allocation9 + $0x3c] sm:$0xf]
      %v713 = vld [vmem:[%s5] sm:$0x1]
      %v715 = vlaneseq
      %v716 = vshrl.u32 %v715, 7
      %v717 = vsub.s32 0, %v716
      %v718 = vrot.slane %v713, %v717
      %v736 = vunpack.c.l.b16 %v697
      %v737 = vunpack.c.l.b16 %v698
      %v738 = vunpack.c.l.b16 %v699
      %v739 = vunpack.c.l.b16 %v700
      %v740 = vunpack.c.l.b16 %v701
      %v741 = vunpack.c.l.b16 %v702
      %v742 = vunpack.c.l.b16 %v703
      %v743 = vunpack.c.l.b16 %v704
      %v744 = vunpack.c.l.b16 %v705
      %v745 = vunpack.c.l.b16 %v706
      %v746 = vunpack.c.l.b16 %v707
      %v747 = vunpack.c.l.b16 %v708
      %v748 = vunpack.c.l.b16 %v709
      %v749 = vunpack.c.l.b16 %v710
      %v750 = vunpack.c.l.b16 %v711
      %v751 = vunpack.c.l.b16 %v712
      %v752 = vpack.c.b16 %v737, %v736
      %v753 = vpack.c.b16 %v739, %v738
      %v754 = vpack.c.b16 %v741, %v740
      %v755 = vpack.c.b16 %v743, %v742
      %v756 = vpack.c.b16 %v745, %v744
      %v757 = vpack.c.b16 %v747, %v746
      %v758 = vpack.c.b16 %v749, %v748
      %v759 = vpack.c.b16 %v751, %v750
      %768 = vmatprep.subr.bf16.mxu0 0
      %769 = vmatpush1.bf16.msra.mxu0 %v759
      %770 = vmatprep.subr.bf16.mxu0 0
      %771 = vmatpush1.bf16.msra.mxu0 %v758
      %772 = vmatprep.subr.bf16.mxu0 0
      %773 = vmatpush1.bf16.msra.mxu0 %v757
      %774 = vmatprep.subr.bf16.mxu0 0
      %775 = vmatpush1.bf16.msra.mxu0 %v756
      %776 = vmatprep.subr.bf16.mxu0 0
      %777 = vmatpush1.bf16.msra.mxu0 %v755
      %778 = vmatprep.subr.bf16.mxu0 0
      %779 = vmatpush1.bf16.msra.mxu0 %v754
      %780 = vmatprep.subr.bf16.mxu0 0
      %781 = vmatpush1.bf16.msra.mxu0 %v753
      %782 = vmatprep.subr.bf16.mxu0 0
      %783 = vmatpush1.bf16.msra.mxu0 %v752
      %784 = vmatprep.subr.bf16.mxu0 0
      %785 = vmatpush2.bf16.msra.mxu0 0
      %786 = vmatprep.subr.bf16.mxu0 0
      %787 = vmatpush2.bf16.msra.mxu0 0
      %788 = vmatprep.subr.bf16.mxu0 0
      %789 = vmatpush2.bf16.msra.mxu0 0
      %790 = vmatprep.subr.bf16.mxu0 0
      %791 = vmatpush2.bf16.msra.mxu0 0
      %792 = vmatprep.subr.bf16.mxu0 0
      %793 = vmatpush2.bf16.msra.mxu0 0
      %794 = vmatprep.subr.bf16.mxu0 0
      %795 = vmatpush2.bf16.msra.mxu0 0
      %796 = vmatprep.subr.bf16.mxu0 0
      %797 = vmatpush2.bf16.msra.mxu0 0
      %798 = vmatprep.subr.bf16.mxu0 0
      %799 = vmatpush2.bf16.msra.mxu0 0
      %800 = vmatprep.mubr.bf16.mxu0 0
      %801 = vmatmul.mubr.bf16.gmra.mxu0 %v696
      %v802 = vpop.f32.mrf.mxu0
      %v803 = vadd.f32 %v718, %v802
      %v804 = vpop.f32.mrf.mxu0
      %v805 = vpop.f32.mrf.mxu0
      %v806 = vadd.f32 %v718, %v805
      %v807 = vpop.f32.mrf.mxu0
      %808 = vdwg.mxu0
      %v809 = vmax.f32 %v803, 0.0
      %v810 = vmax.f32 %v806, 0.0
      %v811 = vpack.c.bf16 %v810, %v809
      %v812 = vld [vmem:[#allocation11] sm:$0xf]
      %v813 = vld [vmem:[#allocation11 + $0x4] sm:$0xf]
      %v814 = vld [vmem:[#allocation11 + $0x8] sm:$0xf]
      %v815 = vld [vmem:[#allocation11 + $0xc] sm:$0xf]
      %v816 = vld [vmem:[#allocation11 + $0x10] sm:$0xf]
      %v817 = vld [vmem:[#allocation11 + $0x14] sm:$0xf]
      %v818 = vld [vmem:[#allocation11 + $0x18] sm:$0xf]
      %v819 = vld [vmem:[#allocation11 + $0x1c] sm:$0xf]
      %v820 = vld [vmem:[#allocation11 + $0x20] sm:$0xf]
      %v821 = vld [vmem:[#allocation11 + $0x24] sm:$0xf]
      %v822 = vld [vmem:[#allocation11 + $0x28] sm:$0xf]
      %v823 = vld [vmem:[#allocation11 + $0x2c] sm:$0xf]
      %v824 = vld [vmem:[#allocation11 + $0x30] sm:$0xf]
      %v825 = vld [vmem:[#allocation11 + $0x34] sm:$0xf]
      %v826 = vld [vmem:[#allocation11 + $0x38] sm:$0xf]
      %v827 = vld [vmem:[#allocation11 + $0x3c] sm:$0xf]
      %v828 = vld [vmem:[%s7] sm:$0x1]
      %v830 = vlaneseq
      %v831 = vshrl.u32 %v830, 7
      %v832 = vsub.s32 0, %v831
      %v833 = vrot.slane %v828, %v832
      %v851 = vunpack.c.l.b16 %v812
      %v852 = vunpack.c.l.b16 %v813
      %v853 = vunpack.c.l.b16 %v814
      %v854 = vunpack.c.l.b16 %v815
      %v855 = vunpack.c.l.b16 %v816
      %v856 = vunpack.c.l.b16 %v817
      %v857 = vunpack.c.l.b16 %v818
      %v858 = vunpack.c.l.b16 %v819
      %v859 = vunpack.c.l.b16 %v820
      %v860 = vunpack.c.l.b16 %v821
      %v861 = vunpack.c.l.b16 %v822
      %v862 = vunpack.c.l.b16 %v823
      %v863 = vunpack.c.l.b16 %v824
      %v864 = vunpack.c.l.b16 %v825
      %v865 = vunpack.c.l.b16 %v826
      %v866 = vunpack.c.l.b16 %v827
      %v867 = vpack.c.b16 %v852, %v851
      %v868 = vpack.c.b16 %v854, %v853
      %v869 = vpack.c.b16 %v856, %v855
      %v870 = vpack.c.b16 %v858, %v857
      %v871 = vpack.c.b16 %v860, %v859
      %v872 = vpack.c.b16 %v862, %v861
      %v873 = vpack.c.b16 %v864, %v863
      %v874 = vpack.c.b16 %v866, %v865
      %883 = vmatprep.subr.bf16.mxu0 0
      %884 = vmatpush1.bf16.msra.mxu0 %v874
      %885 = vmatprep.subr.bf16.mxu0 0
      %886 = vmatpush1.bf16.msra.mxu0 %v873
      %887 = vmatprep.subr.bf16.mxu0 0
      %888 = vmatpush1.bf16.msra.mxu0 %v872
      %889 = vmatprep.subr.bf16.mxu0 0
      %890 = vmatpush1.bf16.msra.mxu0 %v871
      %891 = vmatprep.subr.bf16.mxu0 0
      %892 = vmatpush1.bf16.msra.mxu0 %v870
      %893 = vmatprep.subr.bf16.mxu0 0
      %894 = vmatpush1.bf16.msra.mxu0 %v869
      %895 = vmatprep.subr.bf16.mxu0 0
      %896 = vmatpush1.bf16.msra.mxu0 %v868
      %897 = vmatprep.subr.bf16.mxu0 0
      %898 = vmatpush1.bf16.msra.mxu0 %v867
      %899 = vmatprep.subr.bf16.mxu0 0
      %900 = vmatpush2.bf16.msra.mxu0 0
      %901 = vmatprep.subr.bf16.mxu0 0
      %902 = vmatpush2.bf16.msra.mxu0 0
      %903 = vmatprep.subr.bf16.mxu0 0
      %904 = vmatpush2.bf16.msra.mxu0 0
      %905 = vmatprep.subr.bf16.mxu0 0
      %906 = vmatpush2.bf16.msra.mxu0 0
      %907 = vmatprep.subr.bf16.mxu0 0
      %908 = vmatpush2.bf16.msra.mxu0 0
      %909 = vmatprep.subr.bf16.mxu0 0
      %910 = vmatpush2.bf16.msra.mxu0 0
      %911 = vmatprep.subr.bf16.mxu0 0
      %912 = vmatpush2.bf16.msra.mxu0 0
      %913 = vmatprep.subr.bf16.mxu0 0
      %914 = vmatpush2.bf16.msra.mxu0 0
      %915 = vmatprep.mubr.bf16.mxu0 0
      %916 = vmatmul.mubr.bf16.gmra.mxu0 %v811
      %v917 = vpop.f32.mrf.mxu0
      %v918 = vadd.f32 %v833, %v917
      %v919 = vpop.f32.mrf.mxu0
      %v920 = vpop.f32.mrf.mxu0
      %v921 = vadd.f32 %v833, %v920
      %v922 = vpop.f32.mrf.mxu0
      %923 = vdwg.mxu0
      %v924 = vmax.f32 %v918, 0.0
      %v925 = vmax.f32 %v921, 0.0
      %v926 = vpack.c.bf16 %v925, %v924
      %v927 = vld [vmem:[#allocation12] sm:$0xf]
      %v928 = vld [vmem:[#allocation12 + $0x4] sm:$0xf]
      %v929 = vld [vmem:[#allocation12 + $0x8] sm:$0xf]
      %v930 = vld [vmem:[#allocation12 + $0xc] sm:$0xf]
      %v931 = vld [vmem:[#allocation12 + $0x10] sm:$0xf]
      %v932 = vld [vmem:[#allocation12 + $0x14] sm:$0xf]
      %v933 = vld [vmem:[#allocation12 + $0x18] sm:$0xf]
      %v934 = vld [vmem:[#allocation12 + $0x1c] sm:$0xf]
      %v935 = vld [vmem:[#allocation12 + $0x20] sm:$0xf]
      %v936 = vld [vmem:[#allocation12 + $0x24] sm:$0xf]
      %v937 = vld [vmem:[#allocation12 + $0x28] sm:$0xf]
      %v938 = vld [vmem:[#allocation12 + $0x2c] sm:$0xf]
      %v939 = vld [vmem:[#allocation12 + $0x30] sm:$0xf]
      %v940 = vld [vmem:[#allocation12 + $0x34] sm:$0xf]
      %v941 = vld [vmem:[#allocation12 + $0x38] sm:$0xf]
      %v942 = vld [vmem:[#allocation12 + $0x3c] sm:$0xf]
      %v943 = vld [vmem:[%s9] sm:$0x1]
      %v945 = vlaneseq
      %v946 = vshrl.u32 %v945, 7
      %v947 = vsub.s32 0, %v946
      %v948 = vrot.slane %v943, %v947
      %v966 = vunpack.c.l.b16 %v927
      %v967 = vunpack.c.l.b16 %v928
      %v968 = vunpack.c.l.b16 %v929
      %v969 = vunpack.c.l.b16 %v930
      %v970 = vunpack.c.l.b16 %v931
      %v971 = vunpack.c.l.b16 %v932
      %v972 = vunpack.c.l.b16 %v933
      %v973 = vunpack.c.l.b16 %v934
      %v974 = vunpack.c.l.b16 %v935
      %v975 = vunpack.c.l.b16 %v936
      %v976 = vunpack.c.l.b16 %v937
      %v977 = vunpack.c.l.b16 %v938
      %v978 = vunpack.c.l.b16 %v939
      %v979 = vunpack.c.l.b16 %v940
      %v980 = vunpack.c.l.b16 %v941
      %v981 = vunpack.c.l.b16 %v942
      %v982 = vpack.c.b16 %v967, %v966
      %v983 = vpack.c.b16 %v969, %v968
      %v984 = vpack.c.b16 %v971, %v970
      %v985 = vpack.c.b16 %v973, %v972
      %v986 = vpack.c.b16 %v975, %v974
      %v987 = vpack.c.b16 %v977, %v976
      %v988 = vpack.c.b16 %v979, %v978
      %v989 = vpack.c.b16 %v981, %v980
      %998 = vmatprep.subr.bf16.mxu0 0
      %999 = vmatpush1.bf16.msra.mxu0 %v989
      %1000 = vmatprep.subr.bf16.mxu0 0
      %1001 = vmatpush1.bf16.msra.mxu0 %v988
      %1002 = vmatprep.subr.bf16.mxu0 0
      %1003 = vmatpush1.bf16.msra.mxu0 %v987
      %1004 = vmatprep.subr.bf16.mxu0 0
      %1005 = vmatpush1.bf16.msra.mxu0 %v986
      %1006 = vmatprep.subr.bf16.mxu0 0
      %1007 = vmatpush1.bf16.msra.mxu0 %v985
      %1008 = vmatprep.subr.bf16.mxu0 0
      %1009 = vmatpush1.bf16.msra.mxu0 %v984
      %1010 = vmatprep.subr.bf16.mxu0 0
      %1011 = vmatpush1.bf16.msra.mxu0 %v983
      %1012 = vmatprep.subr.bf16.mxu0 0
      %1013 = vmatpush1.bf16.msra.mxu0 %v982
      %1014 = vmatprep.subr.bf16.mxu0 0
      %1015 = vmatpush2.bf16.msra.mxu0 0
      %1016 = vmatprep.subr.bf16.mxu0 0
      %1017 = vmatpush2.bf16.msra.mxu0 0
      %1018 = vmatprep.subr.bf16.mxu0 0
      %1019 = vmatpush2.bf16.msra.mxu0 0
      %1020 = vmatprep.subr.bf16.mxu0 0
      %1021 = vmatpush2.bf16.msra.mxu0 0
      %1022 = vmatprep.subr.bf16.mxu0 0
      %1023 = vmatpush2.bf16.msra.mxu0 0
      %1024 = vmatprep.subr.bf16.mxu0 0
      %1025 = vmatpush2.bf16.msra.mxu0 0
      %1026 = vmatprep.subr.bf16.mxu0 0
      %1027 = vmatpush2.bf16.msra.mxu0 0
      %1028 = vmatprep.subr.bf16.mxu0 0
      %1029 = vmatpush2.bf16.msra.mxu0 0
      %1030 = vmatprep.mubr.bf16.mxu0 0
      %1031 = vmatmul.mubr.bf16.gmra.mxu0 %v926
      %v1032 = vpop.f32.mrf.mxu0
      %v1033 = vadd.f32 %v948, %v1032
      %v1034 = vpop.f32.mrf.mxu0
      %v1035 = vpop.f32.mrf.mxu0
      %v1036 = vadd.f32 %v948, %v1035
      %v1037 = vpop.f32.mrf.mxu0
      %1038 = vdwg.mxu0
      %1039 = vst [vmem:[#allocation14] sm:$0xff] %v1033
      %1040 = vst [vmem:[#allocation14 + $0x8] sm:$0xff] %v1036
    $region73: #{tpu_custom_call.1} parent=1 // pred_fallthru
      _
    // Predicated region
    $region74: #{tpu_custom_call.1} parent=1 // pred_check
      _
    $region75: #{tpu_custom_call.1} parent=1 // pred_check_branch
      %1042 = sbr.rel (0) target = $region77
    $region76: #{tpu_custom_call.1} parent=1 // pred_region
      %s1044 = ssub.s32 256, 256
      %1045 = vsyncadd [#allocation5], %s1044
      %s1046 = sshll.u32 [#allocation14], 4
      %s1047 = int_to_ptr.vmem [resolvable:$true] %s1046
      %1052 = dma.vmem_to_hbm [thread:$0]  %s1047, 256, %s10, [#allocation5], 128, 128, 8
    $region77: #{tpu_custom_call.1} parent=1 // pred_fallthru
      _
    // Predicated region
    $region78: #{tpu_custom_call.1} parent=1 // pred_check
      _
    $region79: #{tpu_custom_call.1} parent=1 // pred_check_branch
      %1054 = sbr.rel (0) target = $region81
    $region80: #{tpu_custom_call.1} parent=1 // pred_region
      %1055 = dma.done [#allocation5], 256
    $region81: #{tpu_custom_call.1} parent=1 // pred_fallthru
      _
    %1056 = vsyncpa [#allocation4], 1
    %1057 = vsyncpa [#allocation7], 1
    %1058 = vsyncpa [#allocation10], 1
    %1059 = vsyncpa [#allocation13], 1
    %1060 = vsyncpa [#allocation5], 1

</llo_original>
